<compile_context>
chip_gen: v6e
topology: v6e:2x2x1
jax: 0.10.0
libtpu: 0.0.40
codegen_flags: <defaults>
</compile_context>

<pallas_src>
import functools

import jax
import jax.numpy as jnp
from jax.experimental import pallas as pl
from jax.experimental.pallas import tpu as pltpu

A3_IDX = [0, 1, 3, 4, 5, 6, 7]
A6_IDX = [0, 1, 2, 3, 4, 6, 7]
A9_IDX = [0, 1, 2, 3, 4, 5, 6, 7]
HEAD_INDICES = (A3_IDX, A6_IDX, A9_IDX)


# --------------------------------------------------------------------------- #
# Pallas kernel: single invocation, everything VMEM resident.
# --------------------------------------------------------------------------- #
def _rules_kernel(x_ref, wb_ref, w1_ref, b1_ref, w2_ref, b2_ref, o_ref, *,
                  block_len):
    L = block_len

    # In-kernel f32 -> bf16 cast of the activations (saves an HBM round trip
    # vs. casting in the wrapper).
    x = x_ref[...].astype(jnp.bfloat16)                       # (B, 8*D)

    # Context binding + superposition for all three heads in one MXU pass.
    sup = jnp.dot(x, wb_ref[...],
                  preferred_element_type=jnp.float32)         # (B, 3*D) f32

    # MLP layer 1 for all (rule, head) groups at once (block-diag over heads).
    h = jnp.dot(sup.astype(jnp.bfloat16), w1_ref[...],
                preferred_element_type=jnp.float32)           # (B, G*H)
    h = jnp.maximum(h + b1_ref[...], 0.0)

    # MLP layer 2 for all (rule, head) groups at once (block-diag over groups).
    o = jnp.dot(h.astype(jnp.bfloat16), w2_ref[...],
                preferred_element_type=jnp.float32)           # (B, G*DOUT)
    o = o + b2_ref[...]

    # Lane-resident blockwise softmax over contiguous length-L blocks.
    # Per-block max and per-block sum are computed with a log2(L)-step
    # blockwise-circular roll/combine tree: rolls land on the XLU slot,
    # select/max/add on the VPU, no helper matrix in VMEM.  The resulting
    # per-block max is bit-identical across its block, so subtracting it is
    # an exact softmax shift (no cross-block contamination / underflow).
    T = o.shape[-1]
    last = o.ndim - 1
    pos = jax.lax.broadcasted_iota(jnp.int32, o.shape, last) % L

    def block_allreduce(v, combine):
        s = 1
        while s < L:
            hi = pltpu.roll(v, shift=s, axis=last)            # v[(j - s)     % T]
            lo = pltpu.roll(v, shift=T + s - L, axis=last)    # v[(j - s + L) % T]
            v = combine(v, jnp.where(pos >= s, hi, lo))       # stays in-block
            s *= 2
        return v

    m = block_allreduce(o, jnp.maximum)          # per-block max, broadcast
    e = jnp.exp(o - m)
    z = block_allreduce(e, jnp.add)              # per-block sum, broadcast
    o_ref[...] = e / z                           # exact divide: PMFs sum to 1


def rules_set_forward(x, wbind_all, w1_big, b1_all, w2_big, b2_all, *,
                      num_rules, d_out_total, block_len):
    """x: (B, 8, D) f32.  Returns (B, num_rules, 3, d_out_total) f32."""
    B, P, D = x.shape
    assert P == 8
    G = num_rules * 3
    T = G * d_out_total

    x_flat = x.reshape(B, P * D)
    # Pad the batch to a sublane multiple so MXU pushes / output stores are
    # unmasked; padded rows are discarded after the call.
    B_pad = max(8, ((B + 7) // 8) * 8)
    if B_pad != B:
        x_flat = jnp.pad(x_flat, ((0, B_pad - B), (0, 0)))

    kernel = functools.partial(_rules_kernel, block_len=block_len)
    out = pl.pallas_call(
        kernel,
        out_shape=jax.ShapeDtypeStruct((B_pad, T), jnp.float32),
        # No grid: single invocation, whole arrays VMEM resident, single
        # buffered (no useless double-buffering of weights).
        compiler_params=pltpu.CompilerParams(
            vmem_limit_bytes=16 * 1024 * 1024),
    )(x_flat, wbind_all, w1_big, b1_all, w2_big, b2_all)

    # Free view: memory order is already [b][r][h][dout].
    return out[:B].reshape(B, num_rules, 3, d_out_total)


# --------------------------------------------------------------------------- #
# Parameter packing (one-time glue, plain JAX)
# --------------------------------------------------------------------------- #
def _circulant(key_vec, L):
    # C[m, j] = key[(j - m) % L]  so that (x @ C)[j] = sum_m x[m] key[(j-m)%L]
    m = jnp.arange(L)[:, None]
    j = jnp.arange(L)[None, :]
    return key_vec[(j - m) % L]


def build_wbind_all(context_keys, D, k):
    """Fold blockwise circular binding + (sum over n panels)/n for all 3 heads
    into a single (8*D, 3*D) matrix (head h occupies columns [h*D:(h+1)*D])."""
    L = D // k
    mats = []
    for idx in HEAD_INDICES:
        n = len(idx)
        W = jnp.zeros((8 * D, D), jnp.float32)
        for p in idx:
            for blk in range(k):
                C = _circulant(context_keys[p, blk], L) / n
                W = W.at[p * D + blk * L:p * D + (blk + 1) * L,
                         blk * L:(blk + 1) * L].set(C)
        mats.append(W)
    return jnp.concatenate(mats, axis=1).astype(jnp.bfloat16)   # (8D, 3D)


def pack_rule_params(w1, b1, w2, b2):
    """Pack per-(rule, head) MLP weights into block-diagonal matrices so that a
    single matmul per layer covers every (rule, head) pair.  Group ordering is
    g = r*3 + h so the kernel output reshapes directly to (B, R, 3, DOUT)."""
    R, NH, D, H = w1.shape
    DOUT = w2.shape[-1]
    G = R * NH
    w1_big = jnp.zeros((NH * D, G * H), jnp.float32)
    w2_big = jnp.zeros((G * H, G * DOUT), jnp.float32)
    b1_parts, b2_parts = [], []
    for r in range(R):
        for h in range(NH):
            g = r * NH + h
            w1_big = w1_big.at[h * D:(h + 1) * D, g * H:(g + 1) * H].set(w1[r, h])
            w2_big = w2_big.at[g * H:(g + 1) * H,
                               g * DOUT:(g + 1) * DOUT].set(w2[r, h])
            b1_parts.append(b1[r, h, 0])
            b2_parts.append(b2[r, h, 0])
    b1_all = jnp.concatenate(b1_parts)[None, :]                 # (1, G*H)
    b2_all = jnp.concatenate(b2_parts)[None, :]                 # (1, G*DOUT)
    return (w1_big.astype(jnp.bfloat16), b1_all,
            w2_big.astype(jnp.bfloat16), b2_all)


# --------------------------------------------------------------------------- #
# Pure-JAX reference (mirrors the torch semantics, f32, for verification)
# --------------------------------------------------------------------------- #
def binding_circular_ref(x_blocks, key_blocks):
    # out[n, c, j] = sum_m x[n, c, m] * key[n, c, (j - m) % L]
    L = x_blocks.shape[-1]
    m = jnp.arange(L)[:, None]
    j = jnp.arange(L)[None, :]
    Kc = key_blocks[..., (j - m) % L]          # (N, k, L, L)
    return jnp.einsum('ncm,ncmj->ncj', x_blocks, Kc)


def reference_forward(x, context_keys, w1, b1, w2, b2, *, k):
    B, P, D = x.shape
    L = D // k
    R = w1.shape[0]
    DOUT = w2.shape[-1]
    rules_out = []
    for r in range(R):
        heads = []
        for h, idx in enumerate(HEAD_INDICES):
            n = len(idx)
            xc = x[:, jnp.array(idx)]                        # (B, n, D)
            xb = xc.reshape(-1, k, L)                        # (B*n, k, L)
            kb = jnp.tile(context_keys[jnp.array(idx)], (B, 1, 1))
            bound = binding_circular_ref(xb, kb).reshape(B, n, D)
            sup = bound.sum(axis=1) / n                      # (B, D)
            hh = jax.nn.relu(sup @ w1[r, h] + b1[r, h, 0])
            o = hh @ w2[r, h] + b2[r, h, 0]                  # (B, DOUT)
            o = jax.nn.softmax(o.reshape(B, DOUT // L, L), axis=-1).reshape(B, DOUT)
            heads.append(o)
        rules_out.append(jnp.stack(heads, axis=1))           # (B, 3, DOUT)
    return jnp.stack(rules_out, axis=1)                      # (B, R, 3, DOUT)


# --------------------------------------------------------------------------- #
if __name__ == "__main__":
    B, P = 2, 8            # batch, context panels
    D, K = 64, 4           # d_vsa, k blocks (block length 16)
    R = 2                  # num_rules
    H = 32                 # MLP hidden width (hidden_layers=1)
    D_OUT = 1              # d_out
    DOUT = D_OUT * D
    L = D // K
    assert D % K == 0, "d_vsa must be divisible by k"
    assert DOUT % L == 0, "d_out*d_vsa must be divisible by the block length"
    assert (L & (L - 1)) == 0, "block length assumed power of two for the roll tree"

    root = jax.random.PRNGKey(0)
    k_x, k_keys, k_w1, k_b1, k_w2, k_b2 = jax.random.split(root, 6)

    # inputs & context keys as blockwise PMFs (VSA generalized sparse block codes)
    x = jax.nn.softmax(
        jax.random.normal(k_x, (B, P, K, D // K), jnp.float32), axis=-1
    ).reshape(B, P, D)
    context_keys = jax.nn.softmax(
        jax.random.normal(k_keys, (P, K, D // K), jnp.float32), axis=-1)

    # deterministic MLP parameters, per (rule, head)
    w1 = 0.1 * jax.random.normal(k_w1, (R, 3, D, H), jnp.float32)
    b1 = 0.1 * jax.random.normal(k_b1, (R, 3, 1, H), jnp.float32)
    w2 = 0.1 * jax.random.normal(k_w2, (R, 3, H, DOUT), jnp.float32)
    b2 = 0.1 * jax.random.normal(k_b2, (R, 3, 1, DOUT), jnp.float32)

    wbind_all = build_wbind_all(context_keys, D, K)              # (8D, 3D) bf16
    w1_big, b1_all, w2_big, b2_all = pack_rule_params(w1, b1, w2, b2)

    out = rules_set_forward(x, wbind_all, w1_big, b1_all, w2_big, b2_all,
                            num_rules=R, d_out_total=DOUT, block_len=L)
    out = jax.block_until_ready(out)
    assert out.shape == (B, R, 3, DOUT), out.shape

    # f32 reference; tolerance accounts for bf16 MXU operands.
    ref = reference_forward(x, context_keys, w1, b1, w2, b2, k=K)
    max_err = float(jnp.max(jnp.abs(out - ref)))
    assert jnp.allclose(out, ref, atol=5e-3, rtol=5e-3), max_err

    # TODO(synk): model='LearnableFormula' branch not implemented (class
    # definition not provided in the source file).
    print("KERNEL_OK")
</pallas_src>

<mosaic_0001>
module attributes {stable_mosaic.version = 11 : i64} {
  func.func @_rules_kernel(%arg0: memref<8x512xf32, #tpu.memory_space<vmem>>, %arg1: memref<512x192xbf16, #tpu.memory_space<vmem>>, %arg2: memref<192x192xbf16, #tpu.memory_space<vmem>>, %arg3: memref<1x192xf32, #tpu.memory_space<vmem>>, %arg4: memref<192x384xbf16, #tpu.memory_space<vmem>>, %arg5: memref<1x384xf32, #tpu.memory_space<vmem>>, %arg6: memref<8x384xf32, #tpu.memory_space<vmem>>) attributes {dimension_semantics = [], scalar_prefetch = 0 : i64, scratch_operands = 0 : i64, tpu.core_type = #tpu.core_type<tc>} {
    %c0 = arith.constant 0 : index
    %c0_0 = arith.constant 0 : index
    %0 = vector.load %arg0[%c0, %c0_0] : memref<8x512xf32, #tpu.memory_space<vmem>>, vector<8x512xf32>
    %1 = arith.truncf %0 : vector<8x512xf32> to vector<8x512xbf16>
    %c0_1 = arith.constant 0 : index
    %c0_2 = arith.constant 0 : index
    %2 = vector.load %arg1[%c0_1, %c0_2] : memref<512x192xbf16, #tpu.memory_space<vmem>>, vector<512x192xbf16>
    %cst = arith.constant dense<0.000000e+00> : vector<8x192xf32>
    %3 = tpu.matmul %1, %2, %cst {dimension_numbers = #tpu.dot_dimension_numbers<[1], [0], [0], [1], [0, 0, 1, 1], [], []>} : vector<8x512xbf16>, vector<512x192xbf16>, vector<8x192xf32> -> vector<8x192xf32>
    %4 = arith.truncf %3 : vector<8x192xf32> to vector<8x192xbf16>
    %c0_3 = arith.constant 0 : index
    %c0_4 = arith.constant 0 : index
    %5 = vector.load %arg2[%c0_3, %c0_4] : memref<192x192xbf16, #tpu.memory_space<vmem>>, vector<192x192xbf16>
    %cst_5 = arith.constant dense<0.000000e+00> : vector<8x192xf32>
    %6 = tpu.matmul %4, %5, %cst_5 {dimension_numbers = #tpu.dot_dimension_numbers<[1], [0], [0], [1], [0, 0, 1, 1], [], []>} : vector<8x192xbf16>, vector<192x192xbf16>, vector<8x192xf32> -> vector<8x192xf32>
    %c0_6 = arith.constant 0 : index
    %c0_7 = arith.constant 0 : index
    %7 = vector.load %arg3[%c0_6, %c0_7] : memref<1x192xf32, #tpu.memory_space<vmem>>, vector<1x192xf32>
    %8 = vector.broadcast %7 : vector<1x192xf32> to vector<8x192xf32>
    %9 = arith.addf %6, %8 : vector<8x192xf32>
    %cst_8 = arith.constant 0.000000e+00 : f32
    %10 = vector.broadcast %cst_8 : f32 to vector<8x192xf32>
    %11 = arith.maximumf %9, %10 : vector<8x192xf32>
    %12 = arith.truncf %11 : vector<8x192xf32> to vector<8x192xbf16>
    %c0_9 = arith.constant 0 : index
    %c0_10 = arith.constant 0 : index
    %13 = vector.load %arg4[%c0_9, %c0_10] : memref<192x384xbf16, #tpu.memory_space<vmem>>, vector<192x384xbf16>
    %cst_11 = arith.constant dense<0.000000e+00> : vector<8x384xf32>
    %14 = tpu.matmul %12, %13, %cst_11 {dimension_numbers = #tpu.dot_dimension_numbers<[1], [0], [0], [1], [0, 0, 1, 1], [], []>} : vector<8x192xbf16>, vector<192x384xbf16>, vector<8x384xf32> -> vector<8x384xf32>
    %c0_12 = arith.constant 0 : index
    %c0_13 = arith.constant 0 : index
    %15 = vector.load %arg5[%c0_12, %c0_13] : memref<1x384xf32, #tpu.memory_space<vmem>>, vector<1x384xf32>
    %16 = vector.broadcast %15 : vector<1x384xf32> to vector<8x384xf32>
    %17 = arith.addf %14, %16 : vector<8x384xf32>
    %18 = tpu.iota {dimensions = array<i32: 1>} : vector<8x384xi32>
    %c16_i32 = arith.constant 16 : i32
    %c0_i32 = arith.constant 0 : i32
    %19 = arith.cmpi eq, %c16_i32, %c0_i32 : i32
    %c1_i32 = arith.constant 1 : i32
    %20 = arith.select %19, %c1_i32, %c16_i32 : i32
    %21 = vector.broadcast %20 : i32 to vector<8x384xi32>
    %22 = arith.remsi %18, %21 : vector<8x384xi32>
    %c0_i32_14 = arith.constant 0 : i32
    %23 = vector.broadcast %c0_i32_14 : i32 to vector<8x384xi32>
    %24 = arith.cmpi ne, %22, %23 : vector<8x384xi32>
    %c0_i32_15 = arith.constant 0 : i32
    %25 = vector.broadcast %c0_i32_15 : i32 to vector<8x384xi32>
    %26 = arith.cmpi slt, %22, %25 : vector<8x384xi32>
    %c0_i32_16 = arith.constant 0 : i32
    %27 = arith.cmpi slt, %20, %c0_i32_16 : i32
    %28 = vector.broadcast %27 : i1 to vector<8x384xi1>
    %29 = vector.broadcast %28 : vector<8x384xi1> to vector<8x384xi1>
    %30 = arith.xori %26, %29 : vector<8x384xi1>
    %31 = arith.andi %30, %24 : vector<8x384xi1>
    %32 = vector.broadcast %20 : i32 to vector<8x384xi32>
    %33 = arith.addi %22, %32 : vector<8x384xi32>
    %34 = arith.select %31, %33, %22 : vector<8x384xi1>, vector<8x384xi32>
    %c1_i32_17 = arith.constant 1 : i32
    %35 = tpu.dynamic_rotate %17 by %c1_i32_17 dim 1 : vector<8x384xf32>, i32 -> vector<8x384xf32>
    %c369_i32 = arith.constant 369 : i32
    %36 = tpu.dynamic_rotate %17 by %c369_i32 dim 1 : vector<8x384xf32>, i32 -> vector<8x384xf32>
    %c1_i32_18 = arith.constant 1 : i32
    %37 = vector.broadcast %c1_i32_18 : i32 to vector<8x384xi32>
    %38 = arith.cmpi sge, %34, %37 : vector<8x384xi32>
    %39 = arith.select %38, %35, %36 : vector<8x384xi1>, vector<8x384xf32>
    %40 = arith.maximumf %17, %39 : vector<8x384xf32>
    %c2_i32 = arith.constant 2 : i32
    %41 = tpu.dynamic_rotate %40 by %c2_i32 dim 1 : vector<8x384xf32>, i32 -> vector<8x384xf32>
    %c370_i32 = arith.constant 370 : i32
    %42 = tpu.dynamic_rotate %40 by %c370_i32 dim 1 : vector<8x384xf32>, i32 -> vector<8x384xf32>
    %c2_i32_19 = arith.constant 2 : i32
    %43 = vector.broadcast %c2_i32_19 : i32 to vector<8x384xi32>
    %44 = arith.cmpi sge, %34, %43 : vector<8x384xi32>
    %45 = arith.select %44, %41, %42 : vector<8x384xi1>, vector<8x384xf32>
    %46 = arith.maximumf %40, %45 : vector<8x384xf32>
    %c4_i32 = arith.constant 4 : i32
    %47 = tpu.dynamic_rotate %46 by %c4_i32 dim 1 : vector<8x384xf32>, i32 -> vector<8x384xf32>
    %c372_i32 = arith.constant 372 : i32
    %48 = tpu.dynamic_rotate %46 by %c372_i32 dim 1 : vector<8x384xf32>, i32 -> vector<8x384xf32>
    %c4_i32_20 = arith.constant 4 : i32
    %49 = vector.broadcast %c4_i32_20 : i32 to vector<8x384xi32>
    %50 = arith.cmpi sge, %34, %49 : vector<8x384xi32>
    %51 = arith.select %50, %47, %48 : vector<8x384xi1>, vector<8x384xf32>
    %52 = arith.maximumf %46, %51 : vector<8x384xf32>
    %c8_i32 = arith.constant 8 : i32
    %53 = tpu.dynamic_rotate %52 by %c8_i32 dim 1 : vector<8x384xf32>, i32 -> vector<8x384xf32>
    %c376_i32 = arith.constant 376 : i32
    %54 = tpu.dynamic_rotate %52 by %c376_i32 dim 1 : vector<8x384xf32>, i32 -> vector<8x384xf32>
    %c8_i32_21 = arith.constant 8 : i32
    %55 = vector.broadcast %c8_i32_21 : i32 to vector<8x384xi32>
    %56 = arith.cmpi sge, %34, %55 : vector<8x384xi32>
    %57 = arith.select %56, %53, %54 : vector<8x384xi1>, vector<8x384xf32>
    %58 = arith.maximumf %52, %57 : vector<8x384xf32>
    %59 = arith.subf %17, %58 : vector<8x384xf32>
    %60 = math.exp %59 : vector<8x384xf32>
    %c1_i32_22 = arith.constant 1 : i32
    %61 = tpu.dynamic_rotate %60 by %c1_i32_22 dim 1 : vector<8x384xf32>, i32 -> vector<8x384xf32>
    %c369_i32_23 = arith.constant 369 : i32
    %62 = tpu.dynamic_rotate %60 by %c369_i32_23 dim 1 : vector<8x384xf32>, i32 -> vector<8x384xf32>
    %c1_i32_24 = arith.constant 1 : i32
    %63 = vector.broadcast %c1_i32_24 : i32 to vector<8x384xi32>
    %64 = arith.cmpi sge, %34, %63 : vector<8x384xi32>
    %65 = arith.select %64, %61, %62 : vector<8x384xi1>, vector<8x384xf32>
    %66 = arith.addf %60, %65 : vector<8x384xf32>
    %c2_i32_25 = arith.constant 2 : i32
    %67 = tpu.dynamic_rotate %66 by %c2_i32_25 dim 1 : vector<8x384xf32>, i32 -> vector<8x384xf32>
    %c370_i32_26 = arith.constant 370 : i32
    %68 = tpu.dynamic_rotate %66 by %c370_i32_26 dim 1 : vector<8x384xf32>, i32 -> vector<8x384xf32>
    %c2_i32_27 = arith.constant 2 : i32
    %69 = vector.broadcast %c2_i32_27 : i32 to vector<8x384xi32>
    %70 = arith.cmpi sge, %34, %69 : vector<8x384xi32>
    %71 = arith.select %70, %67, %68 : vector<8x384xi1>, vector<8x384xf32>
    %72 = arith.addf %66, %71 : vector<8x384xf32>
    %c4_i32_28 = arith.constant 4 : i32
    %73 = tpu.dynamic_rotate %72 by %c4_i32_28 dim 1 : vector<8x384xf32>, i32 -> vector<8x384xf32>
    %c372_i32_29 = arith.constant 372 : i32
    %74 = tpu.dynamic_rotate %72 by %c372_i32_29 dim 1 : vector<8x384xf32>, i32 -> vector<8x384xf32>
    %c4_i32_30 = arith.constant 4 : i32
    %75 = vector.broadcast %c4_i32_30 : i32 to vector<8x384xi32>
    %76 = arith.cmpi sge, %34, %75 : vector<8x384xi32>
    %77 = arith.select %76, %73, %74 : vector<8x384xi1>, vector<8x384xf32>
    %78 = arith.addf %72, %77 : vector<8x384xf32>
    %c8_i32_31 = arith.constant 8 : i32
    %79 = tpu.dynamic_rotate %78 by %c8_i32_31 dim 1 : vector<8x384xf32>, i32 -> vector<8x384xf32>
    %c376_i32_32 = arith.constant 376 : i32
    %80 = tpu.dynamic_rotate %78 by %c376_i32_32 dim 1 : vector<8x384xf32>, i32 -> vector<8x384xf32>
    %c8_i32_33 = arith.constant 8 : i32
    %81 = vector.broadcast %c8_i32_33 : i32 to vector<8x384xi32>
    %82 = arith.cmpi sge, %34, %81 : vector<8x384xi32>
    %83 = arith.select %82, %79, %80 : vector<8x384xi1>, vector<8x384xf32>
    %84 = arith.addf %78, %83 : vector<8x384xf32>
    %85 = arith.divf %60, %84 : vector<8x384xf32>
    %c0_34 = arith.constant 0 : index
    %c0_35 = arith.constant 0 : index
    %86 = vector.load %arg6[%c0_34, %c0_35] : memref<8x384xf32, #tpu.memory_space<vmem>>, vector<8x384xf32>
    tpu.vector_store %arg6[%c0_34, %c0_35], %85 {strides = array<i32>} : memref<8x384xf32, #tpu.memory_space<vmem>>, vector<8x384xf32>,
    return
  }
}

</mosaic_0001>

<llo_original>
// kernel: tpu_custom_call.1
$region0: #{tpu_custom_call.1}
  #allocation0 [shape = 'u32[]', space=smem, size = 0x4, offset = 0x4, fixed_abs, tag = 'smem constant byte address 0x4 - core index']
  #allocation1 [shape = 'u32[144,128]{1,0:T(1,128)}', space=vmem, size = 0x12000, scoped, tag = 'internal scratch']
  %s0 = inlined_call_operand.vmem [shape: f32[8,512], index: 0, kind: input, shape index: {}]
  %s1 = inlined_call_operand.vmem [shape: bf16[512,192], index: 1, kind: input, shape index: {}]
  %s2 = inlined_call_operand.vmem [shape: bf16[192,192], index: 2, kind: input, shape index: {}]
  %s3 = inlined_call_operand.vmem [shape: f32[1,192], index: 3, kind: input, shape index: {}]
  %s4 = inlined_call_operand.vmem [shape: bf16[192,384], index: 4, kind: input, shape index: {}]
  %s5 = inlined_call_operand.vmem [shape: f32[1,384], index: 5, kind: input, shape index: {}]
  %s6 = inlined_call_operand.hbm [shape: f32[8,384], index: 6, kind: output, shape index: {}]
  %s7 = sld [smem:[#allocation0]]
  $region34: #{tpu_custom_call.1} parent=0
    _
  %s9 = ssub.s32 1, %s7
  %s10 = scalar_select 0, %s9, %s7
  $region1: #{tpu_custom_call.1} parent=0
    #allocation2 [shape = 'u8[12288]{0}', space=vmem, size = 0x3000, scoped, tag = 'output window, operand 0, single buffered']
    #allocation3 [shape = 's32[1]{0}', space=sflag, size = 0x4, scoped, tag = 'scoped memory for tpu_custom_call.1']
    %11 = vsyncpa [#allocation3], 0
    // Predicated region
    $region2: #{tpu_custom_call.1} parent=1 // pred_check
      _
    $region3: #{tpu_custom_call.1} parent=1 // pred_check_branch
      %13 = sbr.rel (0) target = $region5
    $region4: #{tpu_custom_call.1} parent=1 // pred_region
      _
    $region5: #{tpu_custom_call.1} parent=1 // pred_fallthru
      _
    // Predicated region
    $region6: #{tpu_custom_call.1} parent=1 // pred_check
      _
    $region7: #{tpu_custom_call.1} parent=1 // pred_check_branch
      %15 = sbr.rel (0) target = $region9
    $region8: #{tpu_custom_call.1} parent=1 // pred_region
      _
    $region9: #{tpu_custom_call.1} parent=1 // pred_fallthru
      _
    // Predicated region
    $region10: #{tpu_custom_call.1} parent=1 // pred_check
      _
    $region11: #{tpu_custom_call.1} parent=1 // pred_check_branch
      %17 = sbr.rel (0) target = $region13
    $region12: #{tpu_custom_call.1} parent=1 // pred_region
      _
    $region13: #{tpu_custom_call.1} parent=1 // pred_fallthru
      _
    // Predicated region
    $region14: #{tpu_custom_call.1} parent=1 // pred_check
      _
    $region15: #{tpu_custom_call.1} parent=1 // pred_check_branch
      %19 = sbr.rel (0) target = $region17
    $region16: #{tpu_custom_call.1} parent=1 // pred_region
      _
    $region17: #{tpu_custom_call.1} parent=1 // pred_fallthru
      _
    // Predicated region
    $region18: #{tpu_custom_call.1} parent=1 // pred_check
      _
    $region19: #{tpu_custom_call.1} parent=1 // pred_check_branch
      %21 = sbr.rel (0) target = $region21
    $region20: #{tpu_custom_call.1} parent=1 // pred_region
      _
    $region21: #{tpu_custom_call.1} parent=1 // pred_fallthru
      _
    // Predicated region
    $region22: #{tpu_custom_call.1} parent=1 // pred_check
      _
    $region23: #{tpu_custom_call.1} parent=1 // pred_check_branch
      %23 = sbr.rel (0) target = $region25
    $region24: #{tpu_custom_call.1} parent=1 // pred_region
      _
    $region25: #{tpu_custom_call.1} parent=1 // pred_fallthru
      _
    %v25 = vld [vmem:[%s0] sm:$0xff]
    %v26 = vld [vmem:[%s0 + $0x8] sm:$0xff]
    %v27 = vld [vmem:[%s0 + $0x10] sm:$0xff]
    %v28 = vld [vmem:[%s0 + $0x18] sm:$0xff]
    %v29 = vpack.c.bf16 %v25, %v25
    %v30 = vpack.c.bf16 %v26, %v26
    %v31 = vpack.c.bf16 %v27, %v27
    %v32 = vpack.c.bf16 %v28, %v28
    %v33 = vld [vmem:[%s1] sm:$0xff]
    %v34 = vld [vmem:[%s1 + $0x8] sm:$0xff]
    %v35 = vld [vmem:[%s1 + $0x10] sm:$0xff]
    %v36 = vld [vmem:[%s1 + $0x18] sm:$0xff]
    %v37 = vld [vmem:[%s1 + $0x20] sm:$0xff]
    %v38 = vld [vmem:[%s1 + $0x28] sm:$0xff]
    %v39 = vld [vmem:[%s1 + $0x30] sm:$0xff]
    %v40 = vld [vmem:[%s1 + $0x38] sm:$0xff]
    %v41 = vld [vmem:[%s1 + $0x40] sm:$0xff]
    %v42 = vld [vmem:[%s1 + $0x48] sm:$0xff]
    %v43 = vld [vmem:[%s1 + $0x50] sm:$0xff]
    %v44 = vld [vmem:[%s1 + $0x58] sm:$0xff]
    %v45 = vld [vmem:[%s1 + $0x60] sm:$0xff]
    %v46 = vld [vmem:[%s1 + $0x68] sm:$0xff]
    %v47 = vld [vmem:[%s1 + $0x70] sm:$0xff]
    %v48 = vld [vmem:[%s1 + $0x78] sm:$0xff]
    %v49 = vld [vmem:[%s1 + $0x80] sm:$0xff]
    %v50 = vld [vmem:[%s1 + $0x88] sm:$0xff]
    %v51 = vld [vmem:[%s1 + $0x90] sm:$0xff]
    %v52 = vld [vmem:[%s1 + $0x98] sm:$0xff]
    %v53 = vld [vmem:[%s1 + $0xa0] sm:$0xff]
    %v54 = vld [vmem:[%s1 + $0xa8] sm:$0xff]
    %v55 = vld [vmem:[%s1 + $0xb0] sm:$0xff]
    %v56 = vld [vmem:[%s1 + $0xb8] sm:$0xff]
    %v57 = vld [vmem:[%s1 + $0xc0] sm:$0xff]
    %v58 = vld [vmem:[%s1 + $0xc8] sm:$0xff]
    %v59 = vld [vmem:[%s1 + $0xd0] sm:$0xff]
    %v60 = vld [vmem:[%s1 + $0xd8] sm:$0xff]
    %v61 = vld [vmem:[%s1 + $0xe0] sm:$0xff]
    %v62 = vld [vmem:[%s1 + $0xe8] sm:$0xff]
    %v63 = vld [vmem:[%s1 + $0xf0] sm:$0xff]
    %v64 = vld [vmem:[%s1 + $0xf8] sm:$0xff]
    %v65 = vld [vmem:[%s1 + $0x100] sm:$0xff]
    %v66 = vld [vmem:[%s1 + $0x108] sm:$0xff]
    %v67 = vld [vmem:[%s1 + $0x110] sm:$0xff]
    %v68 = vld [vmem:[%s1 + $0x118] sm:$0xff]
    %v69 = vld [vmem:[%s1 + $0x120] sm:$0xff]
    %v70 = vld [vmem:[%s1 + $0x128] sm:$0xff]
    %v71 = vld [vmem:[%s1 + $0x130] sm:$0xff]
    %v72 = vld [vmem:[%s1 + $0x138] sm:$0xff]
    %v73 = vld [vmem:[%s1 + $0x140] sm:$0xff]
    %v74 = vld [vmem:[%s1 + $0x148] sm:$0xff]
    %v75 = vld [vmem:[%s1 + $0x150] sm:$0xff]
    %v76 = vld [vmem:[%s1 + $0x158] sm:$0xff]
    %v77 = vld [vmem:[%s1 + $0x160] sm:$0xff]
    %v78 = vld [vmem:[%s1 + $0x168] sm:$0xff]
    %v79 = vld [vmem:[%s1 + $0x170] sm:$0xff]
    %v80 = vld [vmem:[%s1 + $0x178] sm:$0xff]
    %v81 = vld [vmem:[%s1 + $0x180] sm:$0xff]
    %v82 = vld [vmem:[%s1 + $0x188] sm:$0xff]
    %v83 = vld [vmem:[%s1 + $0x190] sm:$0xff]
    %v84 = vld [vmem:[%s1 + $0x198] sm:$0xff]
    %v85 = vld [vmem:[%s1 + $0x1a0] sm:$0xff]
    %v86 = vld [vmem:[%s1 + $0x1a8] sm:$0xff]
    %v87 = vld [vmem:[%s1 + $0x1b0] sm:$0xff]
    %v88 = vld [vmem:[%s1 + $0x1b8] sm:$0xff]
    %v89 = vld [vmem:[%s1 + $0x1c0] sm:$0xff]
    %v90 = vld [vmem:[%s1 + $0x1c8] sm:$0xff]
    %v91 = vld [vmem:[%s1 + $0x1d0] sm:$0xff]
    %v92 = vld [vmem:[%s1 + $0x1d8] sm:$0xff]
    %v93 = vld [vmem:[%s1 + $0x1e0] sm:$0xff]
    %v94 = vld [vmem:[%s1 + $0x1e8] sm:$0xff]
    %v95 = vld [vmem:[%s1 + $0x1f0] sm:$0xff]
    %v96 = vld [vmem:[%s1 + $0x1f8] sm:$0xff]
    %v161 = vunpack.c.l.b16 %v33
    %v162 = vunpack.c.h.b16 %v33
    %v163 = vunpack.c.l.b16 %v34
    %v164 = vunpack.c.h.b16 %v34
    %v165 = vunpack.c.l.b16 %v35
    %v166 = vunpack.c.h.b16 %v35
    %v167 = vunpack.c.l.b16 %v36
    %v168 = vunpack.c.h.b16 %v36
    %v169 = vunpack.c.l.b16 %v37
    %v170 = vunpack.c.h.b16 %v37
    %v171 = vunpack.c.l.b16 %v38
    %v172 = vunpack.c.h.b16 %v38
    %v173 = vunpack.c.l.b16 %v39
    %v174 = vunpack.c.h.b16 %v39
    %v175 = vunpack.c.l.b16 %v40
    %v176 = vunpack.c.h.b16 %v40
    %v177 = vunpack.c.l.b16 %v41
    %v178 = vunpack.c.h.b16 %v41
    %v179 = vunpack.c.l.b16 %v42
    %v180 = vunpack.c.h.b16 %v42
    %v181 = vunpack.c.l.b16 %v43
    %v182 = vunpack.c.h.b16 %v43
    %v183 = vunpack.c.l.b16 %v44
    %v184 = vunpack.c.h.b16 %v44
    %v185 = vunpack.c.l.b16 %v45
    %v186 = vunpack.c.h.b16 %v45
    %v187 = vunpack.c.l.b16 %v46
    %v188 = vunpack.c.h.b16 %v46
    %v189 = vunpack.c.l.b16 %v47
    %v190 = vunpack.c.h.b16 %v47
    %v191 = vunpack.c.l.b16 %v48
    %v192 = vunpack.c.h.b16 %v48
    %v193 = vunpack.c.l.b16 %v49
    %v194 = vunpack.c.h.b16 %v49
    %v195 = vunpack.c.l.b16 %v50
    %v196 = vunpack.c.h.b16 %v50
    %v197 = vunpack.c.l.b16 %v51
    %v198 = vunpack.c.h.b16 %v51
    %v199 = vunpack.c.l.b16 %v52
    %v200 = vunpack.c.h.b16 %v52
    %v201 = vunpack.c.l.b16 %v53
    %v202 = vunpack.c.h.b16 %v53
    %v203 = vunpack.c.l.b16 %v54
    %v204 = vunpack.c.h.b16 %v54
    %v205 = vunpack.c.l.b16 %v55
    %v206 = vunpack.c.h.b16 %v55
    %v207 = vunpack.c.l.b16 %v56
    %v208 = vunpack.c.h.b16 %v56
    %v209 = vunpack.c.l.b16 %v57
    %v210 = vunpack.c.h.b16 %v57
    %v211 = vunpack.c.l.b16 %v58
    %v212 = vunpack.c.h.b16 %v58
    %v213 = vunpack.c.l.b16 %v59
    %v214 = vunpack.c.h.b16 %v59
    %v215 = vunpack.c.l.b16 %v60
    %v216 = vunpack.c.h.b16 %v60
    %v217 = vunpack.c.l.b16 %v61
    %v218 = vunpack.c.h.b16 %v61
    %v219 = vunpack.c.l.b16 %v62
    %v220 = vunpack.c.h.b16 %v62
    %v221 = vunpack.c.l.b16 %v63
    %v222 = vunpack.c.h.b16 %v63
    %v223 = vunpack.c.l.b16 %v64
    %v224 = vunpack.c.h.b16 %v64
    %v225 = vunpack.c.l.b16 %v65
    %v226 = vunpack.c.h.b16 %v65
    %v227 = vunpack.c.l.b16 %v66
    %v228 = vunpack.c.h.b16 %v66
    %v229 = vunpack.c.l.b16 %v67
    %v230 = vunpack.c.h.b16 %v67
    %v231 = vunpack.c.l.b16 %v68
    %v232 = vunpack.c.h.b16 %v68
    %v233 = vunpack.c.l.b16 %v69
    %v234 = vunpack.c.h.b16 %v69
    %v235 = vunpack.c.l.b16 %v70
    %v236 = vunpack.c.h.b16 %v70
    %v237 = vunpack.c.l.b16 %v71
    %v238 = vunpack.c.h.b16 %v71
    %v239 = vunpack.c.l.b16 %v72
    %v240 = vunpack.c.h.b16 %v72
    %v241 = vunpack.c.l.b16 %v73
    %v242 = vunpack.c.h.b16 %v73
    %v243 = vunpack.c.l.b16 %v74
    %v244 = vunpack.c.h.b16 %v74
    %v245 = vunpack.c.l.b16 %v75
    %v246 = vunpack.c.h.b16 %v75
    %v247 = vunpack.c.l.b16 %v76
    %v248 = vunpack.c.h.b16 %v76
    %v249 = vunpack.c.l.b16 %v77
    %v250 = vunpack.c.h.b16 %v77
    %v251 = vunpack.c.l.b16 %v78
    %v252 = vunpack.c.h.b16 %v78
    %v253 = vunpack.c.l.b16 %v79
    %v254 = vunpack.c.h.b16 %v79
    %v255 = vunpack.c.l.b16 %v80
    %v256 = vunpack.c.h.b16 %v80
    %v257 = vunpack.c.l.b16 %v81
    %v258 = vunpack.c.h.b16 %v81
    %v259 = vunpack.c.l.b16 %v82
    %v260 = vunpack.c.h.b16 %v82
    %v261 = vunpack.c.l.b16 %v83
    %v262 = vunpack.c.h.b16 %v83
    %v263 = vunpack.c.l.b16 %v84
    %v264 = vunpack.c.h.b16 %v84
    %v265 = vunpack.c.l.b16 %v85
    %v266 = vunpack.c.h.b16 %v85
    %v267 = vunpack.c.l.b16 %v86
    %v268 = vunpack.c.h.b16 %v86
    %v269 = vunpack.c.l.b16 %v87
    %v270 = vunpack.c.h.b16 %v87
    %v271 = vunpack.c.l.b16 %v88
    %v272 = vunpack.c.h.b16 %v88
    %v273 = vunpack.c.l.b16 %v89
    %v274 = vunpack.c.h.b16 %v89
    %v275 = vunpack.c.l.b16 %v90
    %v276 = vunpack.c.h.b16 %v90
    %v277 = vunpack.c.l.b16 %v91
    %v278 = vunpack.c.h.b16 %v91
    %v279 = vunpack.c.l.b16 %v92
    %v280 = vunpack.c.h.b16 %v92
    %v281 = vunpack.c.l.b16 %v93
    %v282 = vunpack.c.h.b16 %v93
    %v283 = vunpack.c.l.b16 %v94
    %v284 = vunpack.c.h.b16 %v94
    %v285 = vunpack.c.l.b16 %v95
    %v286 = vunpack.c.h.b16 %v95
    %v287 = vunpack.c.l.b16 %v96
    %v288 = vunpack.c.h.b16 %v96
    %v289 = vpack.c.b16 %v163, %v161
    %v290 = vpack.c.b16 %v164, %v162
    %v291 = vpack.c.b16 %v167, %v165
    %v292 = vpack.c.b16 %v168, %v166
    %v293 = vpack.c.b16 %v171, %v169
    %v294 = vpack.c.b16 %v172, %v170
    %v295 = vpack.c.b16 %v175, %v173
    %v296 = vpack.c.b16 %v176, %v174
    %v297 = vpack.c.b16 %v179, %v177
    %v298 = vpack.c.b16 %v180, %v178
    %v299 = vpack.c.b16 %v183, %v181
    %v300 = vpack.c.b16 %v184, %v182
    %v301 = vpack.c.b16 %v187, %v185
    %v302 = vpack.c.b16 %v188, %v186
    %v303 = vpack.c.b16 %v191, %v189
    %v304 = vpack.c.b16 %v192, %v190
    %v305 = vpack.c.b16 %v195, %v193
    %v306 = vpack.c.b16 %v196, %v194
    %v307 = vpack.c.b16 %v199, %v197
    %v308 = vpack.c.b16 %v200, %v198
    %v309 = vpack.c.b16 %v203, %v201
    %v310 = vpack.c.b16 %v204, %v202
    %v311 = vpack.c.b16 %v207, %v205
    %v312 = vpack.c.b16 %v208, %v206
    %v313 = vpack.c.b16 %v211, %v209
    %v314 = vpack.c.b16 %v212, %v210
    %v315 = vpack.c.b16 %v215, %v213
    %v316 = vpack.c.b16 %v216, %v214
    %v317 = vpack.c.b16 %v219, %v217
    %v318 = vpack.c.b16 %v220, %v218
    %v319 = vpack.c.b16 %v223, %v221
    %v320 = vpack.c.b16 %v224, %v222
    %v321 = vpack.c.b16 %v227, %v225
    %v322 = vpack.c.b16 %v228, %v226
    %v323 = vpack.c.b16 %v231, %v229
    %v324 = vpack.c.b16 %v232, %v230
    %v325 = vpack.c.b16 %v235, %v233
    %v326 = vpack.c.b16 %v236, %v234
    %v327 = vpack.c.b16 %v239, %v237
    %v328 = vpack.c.b16 %v240, %v238
    %v329 = vpack.c.b16 %v243, %v241
    %v330 = vpack.c.b16 %v244, %v242
    %v331 = vpack.c.b16 %v247, %v245
    %v332 = vpack.c.b16 %v248, %v246
    %v333 = vpack.c.b16 %v251, %v249
    %v334 = vpack.c.b16 %v252, %v250
    %v335 = vpack.c.b16 %v255, %v253
    %v336 = vpack.c.b16 %v256, %v254
    %v337 = vpack.c.b16 %v259, %v257
    %v338 = vpack.c.b16 %v260, %v258
    %v339 = vpack.c.b16 %v263, %v261
    %v340 = vpack.c.b16 %v264, %v262
    %v341 = vpack.c.b16 %v267, %v265
    %v342 = vpack.c.b16 %v268, %v266
    %v343 = vpack.c.b16 %v271, %v269
    %v344 = vpack.c.b16 %v272, %v270
    %v345 = vpack.c.b16 %v275, %v273
    %v346 = vpack.c.b16 %v276, %v274
    %v347 = vpack.c.b16 %v279, %v277
    %v348 = vpack.c.b16 %v280, %v278
    %v349 = vpack.c.b16 %v283, %v281
    %v350 = vpack.c.b16 %v284, %v282
    %v351 = vpack.c.b16 %v287, %v285
    %v352 = vpack.c.b16 %v288, %v286
    %417 = vmatprep.subr.bf16.mxu0 %v304
    %418 = vmatpush1.bf16.msra.mxu0 %v303
    %419 = vmatprep.subr.bf16.mxu0 %v302
    %420 = vmatpush1.bf16.msra.mxu0 %v301
    %421 = vmatprep.subr.bf16.mxu0 %v300
    %422 = vmatpush1.bf16.msra.mxu0 %v299
    %423 = vmatprep.subr.bf16.mxu0 %v298
    %424 = vmatpush1.bf16.msra.mxu0 %v297
    %425 = vmatprep.subr.bf16.mxu0 %v296
    %426 = vmatpush1.bf16.msra.mxu0 %v295
    %427 = vmatprep.subr.bf16.mxu0 %v294
    %428 = vmatpush1.bf16.msra.mxu0 %v293
    %429 = vmatprep.subr.bf16.mxu0 %v292
    %430 = vmatpush1.bf16.msra.mxu0 %v291
    %431 = vmatprep.subr.bf16.mxu0 %v290
    %432 = vmatpush1.bf16.msra.mxu0 %v289
    %433 = vmatprep.subr.bf16.mxu0 %v320
    %434 = vmatpush2.bf16.msra.mxu0 %v319
    %435 = vmatprep.subr.bf16.mxu0 %v318
    %436 = vmatpush2.bf16.msra.mxu0 %v317
    %437 = vmatprep.subr.bf16.mxu0 %v316
    %438 = vmatpush2.bf16.msra.mxu0 %v315
    %439 = vmatprep.subr.bf16.mxu0 %v314
    %440 = vmatpush2.bf16.msra.mxu0 %v313
    %441 = vmatprep.subr.bf16.mxu0 %v312
    %442 = vmatpush2.bf16.msra.mxu0 %v311
    %443 = vmatprep.subr.bf16.mxu0 %v310
    %444 = vmatpush2.bf16.msra.mxu0 %v309
    %445 = vmatprep.subr.bf16.mxu0 %v308
    %446 = vmatpush2.bf16.msra.mxu0 %v307
    %447 = vmatprep.subr.bf16.mxu0 %v306
    %448 = vmatpush2.bf16.msra.mxu0 %v305
    %449 = vmatprep.mubr.bf16.mxu0 %v30
    %450 = vmatmul.mubr.bf16.gmra.mxu0 %v29
    %v451 = vpop.f32.mrf.mxu0
    %v452 = vadd.f32 0.0, %v451
    %v453 = vpop.f32.mrf.mxu0
    %v454 = vadd.f32 0.0, %v453
    %v455 = vpop.f32.mrf.mxu0
    %v456 = vpop.f32.mrf.mxu0
    %457 = vdwg.mxu0
    %458 = vmatprep.subr.bf16.mxu0 %v336
    %459 = vmatpush1.bf16.msra.mxu0 %v335
    %460 = vmatprep.subr.bf16.mxu0 %v334
    %461 = vmatpush1.bf16.msra.mxu0 %v333
    %462 = vmatprep.subr.bf16.mxu0 %v332
    %463 = vmatpush1.bf16.msra.mxu0 %v331
    %464 = vmatprep.subr.bf16.mxu0 %v330
    %465 = vmatpush1.bf16.msra.mxu0 %v329
    %466 = vmatprep.subr.bf16.mxu0 %v328
    %467 = vmatpush1.bf16.msra.mxu0 %v327
    %468 = vmatprep.subr.bf16.mxu0 %v326
    %469 = vmatpush1.bf16.msra.mxu0 %v325
    %470 = vmatprep.subr.bf16.mxu0 %v324
    %471 = vmatpush1.bf16.msra.mxu0 %v323
    %472 = vmatprep.subr.bf16.mxu0 %v322
    %473 = vmatpush1.bf16.msra.mxu0 %v321
    %474 = vmatprep.subr.bf16.mxu0 %v352
    %475 = vmatpush2.bf16.msra.mxu0 %v351
    %476 = vmatprep.subr.bf16.mxu0 %v350
    %477 = vmatpush2.bf16.msra.mxu0 %v349
    %478 = vmatprep.subr.bf16.mxu0 %v348
    %479 = vmatpush2.bf16.msra.mxu0 %v347
    %480 = vmatprep.subr.bf16.mxu0 %v346
    %481 = vmatpush2.bf16.msra.mxu0 %v345
    %482 = vmatprep.subr.bf16.mxu0 %v344
    %483 = vmatpush2.bf16.msra.mxu0 %v343
    %484 = vmatprep.subr.bf16.mxu0 %v342
    %485 = vmatpush2.bf16.msra.mxu0 %v341
    %486 = vmatprep.subr.bf16.mxu0 %v340
    %487 = vmatpush2.bf16.msra.mxu0 %v339
    %488 = vmatprep.subr.bf16.mxu0 %v338
    %489 = vmatpush2.bf16.msra.mxu0 %v337
    %490 = vmatprep.mubr.bf16.mxu0 %v32
    %491 = vmatmul.mubr.bf16.gmra.mxu0 %v31
    %v492 = vpop.f32.mrf.mxu0
    %v493 = vadd.f32 %v452, %v492
    %v494 = vpop.f32.mrf.mxu0
    %v495 = vadd.f32 %v454, %v494
    %v496 = vpop.f32.mrf.mxu0
    %v497 = vpop.f32.mrf.mxu0
    %498 = vdwg.mxu0
    %v499 = vpack.c.bf16 %v493, %v493
    %v500 = vpack.c.bf16 %v495, %v495
    %v501 = vld [vmem:[%s2] sm:$0xff]
    %v502 = vld [vmem:[%s2 + $0x8] sm:$0xff]
    %v503 = vld [vmem:[%s2 + $0x10] sm:$0xff]
    %v504 = vld [vmem:[%s2 + $0x18] sm:$0xff]
    %v505 = vld [vmem:[%s2 + $0x20] sm:$0xff]
    %v506 = vld [vmem:[%s2 + $0x28] sm:$0xff]
    %v507 = vld [vmem:[%s2 + $0x30] sm:$0xff]
    %v508 = vld [vmem:[%s2 + $0x38] sm:$0xff]
    %v509 = vld [vmem:[%s2 + $0x40] sm:$0xff]
    %v510 = vld [vmem:[%s2 + $0x48] sm:$0xff]
    %v511 = vld [vmem:[%s2 + $0x50] sm:$0xff]
    %v512 = vld [vmem:[%s2 + $0x58] sm:$0xff]
    %v513 = vld [vmem:[%s2 + $0x60] sm:$0xff]
    %v514 = vld [vmem:[%s2 + $0x68] sm:$0xff]
    %v515 = vld [vmem:[%s2 + $0x70] sm:$0xff]
    %v516 = vld [vmem:[%s2 + $0x78] sm:$0xff]
    %v517 = vld [vmem:[%s2 + $0x80] sm:$0xff]
    %v518 = vld [vmem:[%s2 + $0x88] sm:$0xff]
    %v519 = vld [vmem:[%s2 + $0x90] sm:$0xff]
    %v520 = vld [vmem:[%s2 + $0x98] sm:$0xff]
    %v521 = vld [vmem:[%s2 + $0xa0] sm:$0xff]
    %v522 = vld [vmem:[%s2 + $0xa8] sm:$0xff]
    %v523 = vld [vmem:[%s2 + $0xb0] sm:$0xff]
    %v524 = vld [vmem:[%s2 + $0xb8] sm:$0xff]
    %v525 = vld [vmem:[%s3] sm:$0x3]
    %v527 = vlaneseq
    %v528 = vshrl.u32 %v527, 7
    %v529 = vsub.s32 0, %v528
    %v530 = vrot.slane %v525, %v529
    %v531 = vlaneseq
    %v532 = vshrl.u32 %v531, 7
    %v533 = vsub.s32 1, %v532
    %v534 = vrot.slane %v525, %v533
    %v561 = vunpack.c.l.b16 %v501
    %v562 = vunpack.c.h.b16 %v501
    %v563 = vunpack.c.l.b16 %v502
    %v564 = vunpack.c.h.b16 %v502
    %v565 = vunpack.c.l.b16 %v503
    %v566 = vunpack.c.h.b16 %v503
    %v567 = vunpack.c.l.b16 %v504
    %v568 = vunpack.c.h.b16 %v504
    %v569 = vunpack.c.l.b16 %v505
    %v570 = vunpack.c.h.b16 %v505
    %v571 = vunpack.c.l.b16 %v506
    %v572 = vunpack.c.h.b16 %v506
    %v573 = vunpack.c.l.b16 %v507
    %v574 = vunpack.c.h.b16 %v507
    %v575 = vunpack.c.l.b16 %v508
    %v576 = vunpack.c.h.b16 %v508
    %v577 = vunpack.c.l.b16 %v509
    %v578 = vunpack.c.h.b16 %v509
    %v579 = vunpack.c.l.b16 %v510
    %v580 = vunpack.c.h.b16 %v510
    %v581 = vunpack.c.l.b16 %v511
    %v582 = vunpack.c.h.b16 %v511
    %v583 = vunpack.c.l.b16 %v512
    %v584 = vunpack.c.h.b16 %v512
    %v585 = vunpack.c.l.b16 %v513
    %v586 = vunpack.c.h.b16 %v513
    %v587 = vunpack.c.l.b16 %v514
    %v588 = vunpack.c.h.b16 %v514
    %v589 = vunpack.c.l.b16 %v515
    %v590 = vunpack.c.h.b16 %v515
    %v591 = vunpack.c.l.b16 %v516
    %v592 = vunpack.c.h.b16 %v516
    %v593 = vunpack.c.l.b16 %v517
    %v594 = vunpack.c.h.b16 %v517
    %v595 = vunpack.c.l.b16 %v518
    %v596 = vunpack.c.h.b16 %v518
    %v597 = vunpack.c.l.b16 %v519
    %v598 = vunpack.c.h.b16 %v519
    %v599 = vunpack.c.l.b16 %v520
    %v600 = vunpack.c.h.b16 %v520
    %v601 = vunpack.c.l.b16 %v521
    %v602 = vunpack.c.h.b16 %v521
    %v603 = vunpack.c.l.b16 %v522
    %v604 = vunpack.c.h.b16 %v522
    %v605 = vunpack.c.l.b16 %v523
    %v606 = vunpack.c.h.b16 %v523
    %v607 = vunpack.c.l.b16 %v524
    %v608 = vunpack.c.h.b16 %v524
    %v609 = vpack.c.b16 %v563, %v561
    %v610 = vpack.c.b16 %v564, %v562
    %v611 = vpack.c.b16 %v567, %v565
    %v612 = vpack.c.b16 %v568, %v566
    %v613 = vpack.c.b16 %v571, %v569
    %v614 = vpack.c.b16 %v572, %v570
    %v615 = vpack.c.b16 %v575, %v573
    %v616 = vpack.c.b16 %v576, %v574
    %v617 = vpack.c.b16 %v579, %v577
    %v618 = vpack.c.b16 %v580, %v578
    %v619 = vpack.c.b16 %v583, %v581
    %v620 = vpack.c.b16 %v584, %v582
    %v621 = vpack.c.b16 %v587, %v585
    %v622 = vpack.c.b16 %v588, %v586
    %v623 = vpack.c.b16 %v591, %v589
    %v624 = vpack.c.b16 %v592, %v590
    %v625 = vpack.c.b16 %v595, %v593
    %v626 = vpack.c.b16 %v596, %v594
    %v627 = vpack.c.b16 %v599, %v597
    %v628 = vpack.c.b16 %v600, %v598
    %v629 = vpack.c.b16 %v603, %v601
    %v630 = vpack.c.b16 %v604, %v602
    %v631 = vpack.c.b16 %v607, %v605
    %v632 = vpack.c.b16 %v608, %v606
    %vm657 = vcmask 523264
    %v659 = vsel %vm657, %v500, 0
    %661 = vmatprep.subr.bf16.mxu0 %v624
    %662 = vmatpush1.bf16.msra.mxu0 %v623
    %663 = vmatprep.subr.bf16.mxu0 %v622
    %664 = vmatpush1.bf16.msra.mxu0 %v621
    %665 = vmatprep.subr.bf16.mxu0 %v620
    %666 = vmatpush1.bf16.msra.mxu0 %v619
    %667 = vmatprep.subr.bf16.mxu0 %v618
    %668 = vmatpush1.bf16.msra.mxu0 %v617
    %669 = vmatprep.subr.bf16.mxu0 %v616
    %670 = vmatpush1.bf16.msra.mxu0 %v615
    %671 = vmatprep.subr.bf16.mxu0 %v614
    %672 = vmatpush1.bf16.msra.mxu0 %v613
    %673 = vmatprep.subr.bf16.mxu0 %v612
    %674 = vmatpush1.bf16.msra.mxu0 %v611
    %675 = vmatprep.subr.bf16.mxu0 %v610
    %676 = vmatpush1.bf16.msra.mxu0 %v609
    %677 = vmatprep.subr.bf16.mxu0 0
    %678 = vmatpush2.bf16.msra.mxu0 0
    %679 = vmatprep.subr.bf16.mxu0 0
    %680 = vmatpush2.bf16.msra.mxu0 0
    %681 = vmatprep.subr.bf16.mxu0 0
    %682 = vmatpush2.bf16.msra.mxu0 0
    %683 = vmatprep.subr.bf16.mxu0 0
    %684 = vmatpush2.bf16.msra.mxu0 0
    %685 = vmatprep.subr.bf16.mxu0 %v632
    %686 = vmatpush2.bf16.msra.mxu0 %v631
    %687 = vmatprep.subr.bf16.mxu0 %v630
    %688 = vmatpush2.bf16.msra.mxu0 %v629
    %689 = vmatprep.subr.bf16.mxu0 %v628
    %690 = vmatpush2.bf16.msra.mxu0 %v627
    %691 = vmatprep.subr.bf16.mxu0 %v626
    %692 = vmatpush2.bf16.msra.mxu0 %v625
    %693 = vmatprep.mubr.bf16.mxu0 %v659
    %694 = vmatmul.mubr.bf16.gmra.mxu0 %v499
    %v695 = vpop.f32.mrf.mxu0
    %v696 = vadd.f32 %v530, %v695
    %v697 = vpop.f32.mrf.mxu0
    %v698 = vadd.f32 %v534, %v697
    %v699 = vpop.f32.mrf.mxu0
    %v700 = vpop.f32.mrf.mxu0
    %701 = vdwg.mxu0
    %v702 = vmax.f32 %v696, 0.0
    %v703 = vmax.f32 %v698, 0.0
    %v704 = vpack.c.bf16 %v702, %v702
    %v705 = vpack.c.bf16 %v703, %v703
    %v706 = vld [vmem:[%s4] sm:$0xff]
    %v707 = vld [vmem:[%s4 + $0x8] sm:$0xf]
    %v708 = vld [vmem:[%s4 + $0xc] sm:$0xff]
    %v709 = vld [vmem:[%s4 + $0x14] sm:$0xf]
    %v710 = vld [vmem:[%s4 + $0x18] sm:$0xff]
    %v711 = vld [vmem:[%s4 + $0x20] sm:$0xf]
    %v712 = vld [vmem:[%s4 + $0x24] sm:$0xff]
    %v713 = vld [vmem:[%s4 + $0x2c] sm:$0xf]
    %v714 = vld [vmem:[%s4 + $0x30] sm:$0xff]
    %v715 = vld [vmem:[%s4 + $0x38] sm:$0xf]
    %v716 = vld [vmem:[%s4 + $0x3c] sm:$0xff]
    %v717 = vld [vmem:[%s4 + $0x44] sm:$0xf]
    %v718 = vld [vmem:[%s4 + $0x48] sm:$0xff]
    %v719 = vld [vmem:[%s4 + $0x50] sm:$0xf]
    %v720 = vld [vmem:[%s4 + $0x54] sm:$0xff]
    %v721 = vld [vmem:[%s4 + $0x5c] sm:$0xf]
    %v722 = vld [vmem:[%s4 + $0x60] sm:$0xff]
    %v723 = vld [vmem:[%s4 + $0x68] sm:$0xf]
    %v724 = vld [vmem:[%s4 + $0x6c] sm:$0xff]
    %v725 = vld [vmem:[%s4 + $0x74] sm:$0xf]
    %v726 = vld [vmem:[%s4 + $0x78] sm:$0xff]
    %v727 = vld [vmem:[%s4 + $0x80] sm:$0xf]
    %v728 = vld [vmem:[%s4 + $0x84] sm:$0xff]
    %v729 = vld [vmem:[%s4 + $0x8c] sm:$0xf]
    %v730 = vld [vmem:[%s4 + $0x90] sm:$0xff]
    %v731 = vld [vmem:[%s4 + $0x98] sm:$0xf]
    %v732 = vld [vmem:[%s4 + $0x9c] sm:$0xff]
    %v733 = vld [vmem:[%s4 + $0xa4] sm:$0xf]
    %v734 = vld [vmem:[%s4 + $0xa8] sm:$0xff]
    %v735 = vld [vmem:[%s4 + $0xb0] sm:$0xf]
    %v736 = vld [vmem:[%s4 + $0xb4] sm:$0xff]
    %v737 = vld [vmem:[%s4 + $0xbc] sm:$0xf]
    %v738 = vld [vmem:[%s4 + $0xc0] sm:$0xff]
    %v739 = vld [vmem:[%s4 + $0xc8] sm:$0xf]
    %v740 = vld [vmem:[%s4 + $0xcc] sm:$0xff]
    %v741 = vld [vmem:[%s4 + $0xd4] sm:$0xf]
    %v742 = vld [vmem:[%s4 + $0xd8] sm:$0xff]
    %v743 = vld [vmem:[%s4 + $0xe0] sm:$0xf]
    %v744 = vld [vmem:[%s4 + $0xe4] sm:$0xff]
    %v745 = vld [vmem:[%s4 + $0xec] sm:$0xf]
    %v746 = vld [vmem:[%s4 + $0xf0] sm:$0xff]
    %v747 = vld [vmem:[%s4 + $0xf8] sm:$0xf]
    %v748 = vld [vmem:[%s4 + $0xfc] sm:$0xff]
    %v749 = vld [vmem:[%s4 + $0x104] sm:$0xf]
    %v750 = vld [vmem:[%s4 + $0x108] sm:$0xff]
    %v751 = vld [vmem:[%s4 + $0x110] sm:$0xf]
    %v752 = vld [vmem:[%s4 + $0x114] sm:$0xff]
    %v753 = vld [vmem:[%s4 + $0x11c] sm:$0xf]
    %v754 = vld [vmem:[%s5] sm:$0x7]
    %v756 = vlaneseq
    %v757 = vshrl.u32 %v756, 7
    %v758 = vsub.s32 0, %v757
    %v759 = vrot.slane %v754, %v758
    %v760 = vlaneseq
    %v761 = vshrl.u32 %v760, 7
    %v762 = vsub.s32 1, %v761
    %v763 = vrot.slane %v754, %v762
    %v764 = vlaneseq
    %v765 = vshrl.u32 %v764, 7
    %v766 = vsub.s32 2, %v765
    %v767 = vrot.slane %v754, %v766
    %v819 = vunpack.c.l.b16 %v706
    %v820 = vunpack.c.h.b16 %v706
    %v821 = vunpack.c.l.b16 %v707
    %v822 = vunpack.c.l.b16 %v708
    %v823 = vunpack.c.h.b16 %v708
    %v824 = vunpack.c.l.b16 %v709
    %v825 = vunpack.c.l.b16 %v710
    %v826 = vunpack.c.h.b16 %v710
    %v827 = vunpack.c.l.b16 %v711
    %v828 = vunpack.c.l.b16 %v712
    %v829 = vunpack.c.h.b16 %v712
    %v830 = vunpack.c.l.b16 %v713
    %v831 = vunpack.c.l.b16 %v714
    %v832 = vunpack.c.h.b16 %v714
    %v833 = vunpack.c.l.b16 %v715
    %v834 = vunpack.c.l.b16 %v716
    %v835 = vunpack.c.h.b16 %v716
    %v836 = vunpack.c.l.b16 %v717
    %v837 = vunpack.c.l.b16 %v718
    %v838 = vunpack.c.h.b16 %v718
    %v839 = vunpack.c.l.b16 %v719
    %v840 = vunpack.c.l.b16 %v720
    %v841 = vunpack.c.h.b16 %v720
    %v842 = vunpack.c.l.b16 %v721
    %v843 = vunpack.c.l.b16 %v722
    %v844 = vunpack.c.h.b16 %v722
    %v845 = vunpack.c.l.b16 %v723
    %v846 = vunpack.c.l.b16 %v724
    %v847 = vunpack.c.h.b16 %v724
    %v848 = vunpack.c.l.b16 %v725
    %v849 = vunpack.c.l.b16 %v726
    %v850 = vunpack.c.h.b16 %v726
    %v851 = vunpack.c.l.b16 %v727
    %v852 = vunpack.c.l.b16 %v728
    %v853 = vunpack.c.h.b16 %v728
    %v854 = vunpack.c.l.b16 %v729
    %v855 = vunpack.c.l.b16 %v730
    %v856 = vunpack.c.h.b16 %v730
    %v857 = vunpack.c.l.b16 %v731
    %v858 = vunpack.c.l.b16 %v732
    %v859 = vunpack.c.h.b16 %v732
    %v860 = vunpack.c.l.b16 %v733
    %v861 = vunpack.c.l.b16 %v734
    %v862 = vunpack.c.h.b16 %v734
    %v863 = vunpack.c.l.b16 %v735
    %v864 = vunpack.c.l.b16 %v736
    %v865 = vunpack.c.h.b16 %v736
    %v866 = vunpack.c.l.b16 %v737
    %v867 = vunpack.c.l.b16 %v738
    %v868 = vunpack.c.h.b16 %v738
    %v869 = vunpack.c.l.b16 %v739
    %v870 = vunpack.c.l.b16 %v740
    %v871 = vunpack.c.h.b16 %v740
    %v872 = vunpack.c.l.b16 %v741
    %v873 = vunpack.c.l.b16 %v742
    %v874 = vunpack.c.h.b16 %v742
    %v875 = vunpack.c.l.b16 %v743
    %v876 = vunpack.c.l.b16 %v744
    %v877 = vunpack.c.h.b16 %v744
    %v878 = vunpack.c.l.b16 %v745
    %v879 = vunpack.c.l.b16 %v746
    %v880 = vunpack.c.h.b16 %v746
    %v881 = vunpack.c.l.b16 %v747
    %v882 = vunpack.c.l.b16 %v748
    %v883 = vunpack.c.h.b16 %v748
    %v884 = vunpack.c.l.b16 %v749
    %v885 = vunpack.c.l.b16 %v750
    %v886 = vunpack.c.h.b16 %v750
    %v887 = vunpack.c.l.b16 %v751
    %v888 = vunpack.c.l.b16 %v752
    %v889 = vunpack.c.h.b16 %v752
    %v890 = vunpack.c.l.b16 %v753
    %v891 = vpack.c.b16 %v822, %v819
    %v892 = vpack.c.b16 %v823, %v820
    %v893 = vpack.c.b16 %v824, %v821
    %v894 = vpack.c.b16 %v828, %v825
    %v895 = vpack.c.b16 %v829, %v826
    %v896 = vpack.c.b16 %v830, %v827
    %v897 = vpack.c.b16 %v834, %v831
    %v898 = vpack.c.b16 %v835, %v832
    %v899 = vpack.c.b16 %v836, %v833
    %v900 = vpack.c.b16 %v840, %v837
    %v901 = vpack.c.b16 %v841, %v838
    %v902 = vpack.c.b16 %v842, %v839
    %v903 = vpack.c.b16 %v846, %v843
    %v904 = vpack.c.b16 %v847, %v844
    %v905 = vpack.c.b16 %v848, %v845
    %v906 = vpack.c.b16 %v852, %v849
    %v907 = vpack.c.b16 %v853, %v850
    %v908 = vpack.c.b16 %v854, %v851
    %v909 = vpack.c.b16 %v858, %v855
    %v910 = vpack.c.b16 %v859, %v856
    %v911 = vpack.c.b16 %v860, %v857
    %v912 = vpack.c.b16 %v864, %v861
    %v913 = vpack.c.b16 %v865, %v862
    %v914 = vpack.c.b16 %v866, %v863
    %v915 = vpack.c.b16 %v870, %v867
    %v916 = vpack.c.b16 %v871, %v868
    %v917 = vpack.c.b16 %v872, %v869
    %v918 = vpack.c.b16 %v876, %v873
    %v919 = vpack.c.b16 %v877, %v874
    %v920 = vpack.c.b16 %v878, %v875
    %v921 = vpack.c.b16 %v882, %v879
    %v922 = vpack.c.b16 %v883, %v880
    %v923 = vpack.c.b16 %v884, %v881
    %v924 = vpack.c.b16 %v888, %v885
    %v925 = vpack.c.b16 %v889, %v886
    %v926 = vpack.c.b16 %v890, %v887
    %v964 = vsel %vm657, %v705, 0
    %966 = vmatprep.subr.bf16.mxu0 %v913
    %967 = vmatpush1.bf16.msra.mxu0 %v912
    %968 = vmatprep.subr.bf16.mxu0 %v910
    %969 = vmatpush1.bf16.msra.mxu0 %v909
    %970 = vmatprep.subr.bf16.mxu0 %v907
    %971 = vmatpush1.bf16.msra.mxu0 %v906
    %972 = vmatprep.subr.bf16.mxu0 %v904
    %973 = vmatpush1.bf16.msra.mxu0 %v903
    %974 = vmatprep.subr.bf16.mxu0 %v901
    %975 = vmatpush1.bf16.msra.mxu0 %v900
    %976 = vmatprep.subr.bf16.mxu0 %v898
    %977 = vmatpush1.bf16.msra.mxu0 %v897
    %978 = vmatprep.subr.bf16.mxu0 %v895
    %979 = vmatpush1.bf16.msra.mxu0 %v894
    %980 = vmatprep.subr.bf16.mxu0 %v892
    %981 = vmatpush1.bf16.msra.mxu0 %v891
    %982 = vmatprep.subr.bf16.mxu0 0
    %983 = vmatpush2.bf16.msra.mxu0 0
    %984 = vmatprep.subr.bf16.mxu0 0
    %985 = vmatpush2.bf16.msra.mxu0 0
    %986 = vmatprep.subr.bf16.mxu0 0
    %987 = vmatpush2.bf16.msra.mxu0 0
    %988 = vmatprep.subr.bf16.mxu0 0
    %989 = vmatpush2.bf16.msra.mxu0 0
    %990 = vmatprep.subr.bf16.mxu0 %v925
    %991 = vmatpush2.bf16.msra.mxu0 %v924
    %992 = vmatprep.subr.bf16.mxu0 %v922
    %993 = vmatpush2.bf16.msra.mxu0 %v921
    %994 = vmatprep.subr.bf16.mxu0 %v919
    %995 = vmatpush2.bf16.msra.mxu0 %v918
    %996 = vmatprep.subr.bf16.mxu0 %v916
    %997 = vmatpush2.bf16.msra.mxu0 %v915
    %998 = vmatprep.mubr.bf16.mxu0 %v964
    %999 = vmatmul.mubr.bf16.gmra.mxu0 %v704
    %v1000 = vpop.f32.mrf.mxu0
    %v1001 = vadd.f32 %v759, %v1000
    %v1002 = vpop.f32.mrf.mxu0
    %v1003 = vadd.f32 %v763, %v1002
    %v1004 = vpop.f32.mrf.mxu0
    %v1005 = vpop.f32.mrf.mxu0
    %1006 = vdwg.mxu0
    %1007 = vmatprep.subr.bf16.mxu0 0
    %1008 = vmatpush1.bf16.msra.mxu0 %v914
    %1009 = vmatprep.subr.bf16.mxu0 0
    %1010 = vmatpush1.bf16.msra.mxu0 %v911
    %1011 = vmatprep.subr.bf16.mxu0 0
    %1012 = vmatpush1.bf16.msra.mxu0 %v908
    %1013 = vmatprep.subr.bf16.mxu0 0
    %1014 = vmatpush1.bf16.msra.mxu0 %v905
    %1015 = vmatprep.subr.bf16.mxu0 0
    %1016 = vmatpush1.bf16.msra.mxu0 %v902
    %1017 = vmatprep.subr.bf16.mxu0 0
    %1018 = vmatpush1.bf16.msra.mxu0 %v899
    %1019 = vmatprep.subr.bf16.mxu0 0
    %1020 = vmatpush1.bf16.msra.mxu0 %v896
    %1021 = vmatprep.subr.bf16.mxu0 0
    %1022 = vmatpush1.bf16.msra.mxu0 %v893
    %1023 = vmatprep.subr.bf16.mxu0 0
    %1024 = vmatpush2.bf16.msra.mxu0 0
    %1025 = vmatprep.subr.bf16.mxu0 0
    %1026 = vmatpush2.bf16.msra.mxu0 0
    %1027 = vmatprep.subr.bf16.mxu0 0
    %1028 = vmatpush2.bf16.msra.mxu0 0
    %1029 = vmatprep.subr.bf16.mxu0 0
    %1030 = vmatpush2.bf16.msra.mxu0 0
    %1031 = vmatprep.subr.bf16.mxu0 0
    %1032 = vmatpush2.bf16.msra.mxu0 %v926
    %1033 = vmatprep.subr.bf16.mxu0 0
    %1034 = vmatpush2.bf16.msra.mxu0 %v923
    %1035 = vmatprep.subr.bf16.mxu0 0
    %1036 = vmatpush2.bf16.msra.mxu0 %v920
    %1037 = vmatprep.subr.bf16.mxu0 0
    %1038 = vmatpush2.bf16.msra.mxu0 %v917
    %1039 = vmatprep.mubr.bf16.mxu0 %v964
    %1040 = vmatmul.mubr.bf16.gmra.mxu0 %v704
    %v1041 = vpop.f32.mrf.mxu0
    %v1042 = vadd.f32 %v767, %v1041
    %v1043 = vpop.f32.mrf.mxu0
    %v1044 = vpop.f32.mrf.mxu0
    %v1045 = vpop.f32.mrf.mxu0
    %1046 = vdwg.mxu0
    %v1047 = vlaneseq
    %v1048 = vand.u32 %v1047, 127
    %v1049 = vadd.s32 %v1048, 128
    %v1050 = vadd.s32 %v1048, 256
    %vm1051 = vcmp.lt.s32.totalorder %v1048, 0
    %v1052 = vsub.s32 0, %v1048
    %v1053 = vsel %vm1051, %v1052, %v1048
    %v1054 = vshrl.u32 %v1053, 4
    %v1055 = vand.u32 %v1053, 15
    %v1056 = vsub.s32 0, %v1055
    %v1057 = vsel %vm1051, %v1056, %v1055
    %vm1058 = vcmp.lt.s32.totalorder %v1049, 0
    %v1059 = vsub.s32 0, %v1049
    %v1060 = vsel %vm1058, %v1059, %v1049
    %v1061 = vshrl.u32 %v1060, 4
    %v1062 = vand.u32 %v1060, 15
    %v1063 = vsub.s32 0, %v1062
    %v1064 = vsel %vm1058, %v1063, %v1062
    %vm1065 = vcmp.lt.s32.totalorder %v1050, 0
    %v1066 = vsub.s32 0, %v1050
    %v1067 = vsel %vm1065, %v1066, %v1050
    %v1068 = vshrl.u32 %v1067, 4
    %v1069 = vand.u32 %v1067, 15
    %v1070 = vsub.s32 0, %v1069
    %v1071 = vsel %vm1065, %v1070, %v1069
    %vm1072 = vcmp.ne.s32.totalorder %v1057, 0
    %vm1073 = vcmp.ne.s32.totalorder %v1064, 0
    %vm1074 = vcmp.ne.s32.totalorder %v1071, 0
    %vm1075 = vcmp.lt.s32.totalorder %v1057, 0
    %vm1076 = vcmp.lt.s32.totalorder %v1064, 0
    %vm1077 = vcmp.lt.s32.totalorder %v1071, 0
    %vm1078 = vmand %vm1075, %vm1072
    %vm1079 = vmand %vm1076, %vm1073
    %vm1080 = vmand %vm1077, %vm1074
    %v1081 = vadd.s32 %v1057, 16
    %v1082 = vadd.s32 %v1064, 16
    %v1083 = vadd.s32 %v1071, 16
    %v1084 = vsel %vm1078, %v1081, %v1057
    %v1085 = vsel %vm1079, %v1082, %v1064
    %v1086 = vsel %vm1080, %v1083, %v1071
    %1087 = vrot.lane.b32.xlu0 %v1001, 1
    %v1088 = vpop.permute.xlu0 %1087
    %1089 = vrot.lane.b32.xlu0 %v1003, 1
    %v1090 = vpop.permute.xlu0 %1089
    %1091 = vrot.lane.b32.xlu0 %v1042, 1
    %v1092 = vpop.permute.xlu0 %1091
    %vm1093 = vcmp.lt.s32.totalorder %v1048, 1
    %v1094 = vsel %vm1093, %v1090, %v1092
    %v1095 = vsel %vm1093, %v1088, %v1090
    %v1096 = vsel %vm1093, %v1092, %v1088
    %1097 = vrot.lane.b32.xlu0 %v1001, 113
    %v1098 = vpop.permute.xlu0 %1097
    %1099 = vrot.lane.b32.xlu0 %v1003, 113
    %v1100 = vpop.permute.xlu0 %1099
    %1101 = vrot.lane.b32.xlu0 %v1042, 113
    %v1102 = vpop.permute.xlu0 %1101
    %vm1103 = vcmp.lt.s32.totalorder %v1048, 113
    %v1104 = vsel %vm1103, %v1100, %v1102
    %v1105 = vsel %vm1103, %v1098, %v1100
    %v1106 = vsel %vm1103, %v1102, %v1098
    %vm1107 = vcmp.ge.s32.totalorder %v1084, 1
    %vm1108 = vcmp.ge.s32.totalorder %v1085, 1
    %vm1109 = vcmp.ge.s32.totalorder %v1086, 1
    %v1110 = vsel %vm1107, %v1096, %v1105
    %v1111 = vsel %vm1108, %v1095, %v1104
    %v1112 = vsel %vm1109, %v1094, %v1106
    %v1113 = vmax.f32 %v1001, %v1110
    %v1114 = vmax.f32 %v1003, %v1111
    %v1115 = vmax.f32 %v1042, %v1112
    %1116 = vrot.lane.b32.xlu0 %v1113, 2
    %v1117 = vpop.permute.xlu0 %1116
    %1118 = vrot.lane.b32.xlu0 %v1114, 2
    %v1119 = vpop.permute.xlu0 %1118
    %1120 = vrot.lane.b32.xlu0 %v1115, 2
    %v1121 = vpop.permute.xlu0 %1120
    %vm1122 = vcmp.lt.s32.totalorder %v1048, 2
    %v1123 = vsel %vm1122, %v1119, %v1121
    %v1124 = vsel %vm1122, %v1117, %v1119
    %v1125 = vsel %vm1122, %v1121, %v1117
    %1126 = vrot.lane.b32.xlu0 %v1113, 114
    %v1127 = vpop.permute.xlu0 %1126
    %1128 = vrot.lane.b32.xlu0 %v1114, 114
    %v1129 = vpop.permute.xlu0 %1128
    %1130 = vrot.lane.b32.xlu0 %v1115, 114
    %v1131 = vpop.permute.xlu0 %1130
    %vm1132 = vcmp.lt.s32.totalorder %v1048, 114
    %v1133 = vsel %vm1132, %v1129, %v1131
    %v1134 = vsel %vm1132, %v1127, %v1129
    %v1135 = vsel %vm1132, %v1131, %v1127
    %vm1136 = vcmp.ge.s32.totalorder %v1084, 2
    %vm1137 = vcmp.ge.s32.totalorder %v1085, 2
    %vm1138 = vcmp.ge.s32.totalorder %v1086, 2
    %v1139 = vsel %vm1136, %v1125, %v1134
    %v1140 = vsel %vm1137, %v1124, %v1133
    %v1141 = vsel %vm1138, %v1123, %v1135
    %v1142 = vmax.f32 %v1113, %v1139
    %v1143 = vmax.f32 %v1114, %v1140
    %v1144 = vmax.f32 %v1115, %v1141
    %1145 = vrot.lane.b32.xlu0 %v1142, 4
    %v1146 = vpop.permute.xlu0 %1145
    %1147 = vrot.lane.b32.xlu0 %v1143, 4
    %v1148 = vpop.permute.xlu0 %1147
    %1149 = vrot.lane.b32.xlu0 %v1144, 4
    %v1150 = vpop.permute.xlu0 %1149
    %vm1151 = vcmp.lt.s32.totalorder %v1048, 4
    %v1152 = vsel %vm1151, %v1148, %v1150
    %v1153 = vsel %vm1151, %v1146, %v1148
    %v1154 = vsel %vm1151, %v1150, %v1146
    %1155 = vrot.lane.b32.xlu0 %v1142, 116
    %v1156 = vpop.permute.xlu0 %1155
    %1157 = vrot.lane.b32.xlu0 %v1143, 116
    %v1158 = vpop.permute.xlu0 %1157
    %1159 = vrot.lane.b32.xlu0 %v1144, 116
    %v1160 = vpop.permute.xlu0 %1159
    %vm1161 = vcmp.lt.s32.totalorder %v1048, 116
    %v1162 = vsel %vm1161, %v1158, %v1160
    %v1163 = vsel %vm1161, %v1156, %v1158
    %v1164 = vsel %vm1161, %v1160, %v1156
    %vm1165 = vcmp.ge.s32.totalorder %v1084, 4
    %vm1166 = vcmp.ge.s32.totalorder %v1085, 4
    %vm1167 = vcmp.ge.s32.totalorder %v1086, 4
    %v1168 = vsel %vm1165, %v1154, %v1163
    %v1169 = vsel %vm1166, %v1153, %v1162
    %v1170 = vsel %vm1167, %v1152, %v1164
    %v1171 = vmax.f32 %v1142, %v1168
    %v1172 = vmax.f32 %v1143, %v1169
    %v1173 = vmax.f32 %v1144, %v1170
    %1174 = vrot.lane.b32.xlu0 %v1171, 8
    %v1175 = vpop.permute.xlu0 %1174
    %1176 = vrot.lane.b32.xlu0 %v1172, 8
    %v1177 = vpop.permute.xlu0 %1176
    %1178 = vrot.lane.b32.xlu0 %v1173, 8
    %v1179 = vpop.permute.xlu0 %1178
    %vm1180 = vcmp.lt.s32.totalorder %v1048, 8
    %v1181 = vsel %vm1180, %v1177, %v1179
    %v1182 = vsel %vm1180, %v1175, %v1177
    %v1183 = vsel %vm1180, %v1179, %v1175
    %1184 = vrot.lane.b32.xlu0 %v1171, 120
    %v1185 = vpop.permute.xlu0 %1184
    %1186 = vrot.lane.b32.xlu0 %v1172, 120
    %v1187 = vpop.permute.xlu0 %1186
    %1188 = vrot.lane.b32.xlu0 %v1173, 120
    %v1189 = vpop.permute.xlu0 %1188
    %vm1190 = vcmp.lt.s32.totalorder %v1048, 120
    %v1191 = vsel %vm1190, %v1187, %v1189
    %v1192 = vsel %vm1190, %v1185, %v1187
    %v1193 = vsel %vm1190, %v1189, %v1185
    %vm1194 = vcmp.ge.s32.totalorder %v1084, 8
    %vm1195 = vcmp.ge.s32.totalorder %v1085, 8
    %vm1196 = vcmp.ge.s32.totalorder %v1086, 8
    %v1197 = vsel %vm1194, %v1183, %v1192
    %v1198 = vsel %vm1195, %v1182, %v1191
    %v1199 = vsel %vm1196, %v1181, %v1193
    %v1200 = vmax.f32 %v1171, %v1197
    %v1201 = vmax.f32 %v1172, %v1198
    %v1202 = vmax.f32 %v1173, %v1199
    %v1203 = vsub.f32 %v1001, %v1200
    %v1204 = vsub.f32 %v1003, %v1201
    %v1205 = vsub.f32 %v1042, %v1202
    %v1206 = vmul.f32 %v1203, 1.442695
    %v1207 = vpow.pop %v1206
    %v1208 = vmul.f32 %v1204, 1.442695
    %v1209 = vpow.pop %v1208
    %v1210 = vmul.f32 %v1205, 1.442695
    %v1211 = vpow.pop %v1210
    %1212 = vrot.lane.b32.xlu0 %v1207, 1
    %v1213 = vpop.permute.xlu0 %1212
    %1214 = vrot.lane.b32.xlu0 %v1209, 1
    %v1215 = vpop.permute.xlu0 %1214
    %1216 = vrot.lane.b32.xlu0 %v1211, 1
    %v1217 = vpop.permute.xlu0 %1216
    %v1218 = vsel %vm1093, %v1215, %v1217
    %v1219 = vsel %vm1093, %v1213, %v1215
    %v1220 = vsel %vm1093, %v1217, %v1213
    %1221 = vrot.lane.b32.xlu0 %v1207, 113
    %v1222 = vpop.permute.xlu0 %1221
    %1223 = vrot.lane.b32.xlu0 %v1209, 113
    %v1224 = vpop.permute.xlu0 %1223
    %1225 = vrot.lane.b32.xlu0 %v1211, 113
    %v1226 = vpop.permute.xlu0 %1225
    %v1227 = vsel %vm1103, %v1224, %v1226
    %v1228 = vsel %vm1103, %v1222, %v1224
    %v1229 = vsel %vm1103, %v1226, %v1222
    %v1230 = vsel %vm1107, %v1220, %v1228
    %v1231 = vsel %vm1108, %v1219, %v1227
    %v1232 = vsel %vm1109, %v1218, %v1229
    %v1233 = vadd.f32 %v1207, %v1230
    %v1234 = vadd.f32 %v1209, %v1231
    %v1235 = vadd.f32 %v1211, %v1232
    %1236 = vrot.lane.b32.xlu0 %v1233, 2
    %v1237 = vpop.permute.xlu0 %1236
    %1238 = vrot.lane.b32.xlu0 %v1234, 2
    %v1239 = vpop.permute.xlu0 %1238
    %1240 = vrot.lane.b32.xlu0 %v1235, 2
    %v1241 = vpop.permute.xlu0 %1240
    %v1242 = vsel %vm1122, %v1239, %v1241
    %v1243 = vsel %vm1122, %v1237, %v1239
    %v1244 = vsel %vm1122, %v1241, %v1237
    %1245 = vrot.lane.b32.xlu0 %v1233, 114
    %v1246 = vpop.permute.xlu0 %1245
    %1247 = vrot.lane.b32.xlu0 %v1234, 114
    %v1248 = vpop.permute.xlu0 %1247
    %1249 = vrot.lane.b32.xlu0 %v1235, 114
    %v1250 = vpop.permute.xlu0 %1249
    %v1251 = vsel %vm1132, %v1248, %v1250
    %v1252 = vsel %vm1132, %v1246, %v1248
    %v1253 = vsel %vm1132, %v1250, %v1246
    %v1254 = vsel %vm1136, %v1244, %v1252
    %v1255 = vsel %vm1137, %v1243, %v1251
    %v1256 = vsel %vm1138, %v1242, %v1253
    %v1257 = vadd.f32 %v1233, %v1254
    %v1258 = vadd.f32 %v1234, %v1255
    %v1259 = vadd.f32 %v1235, %v1256
    %1260 = vrot.lane.b32.xlu0 %v1257, 4
    %v1261 = vpop.permute.xlu0 %1260
    %1262 = vrot.lane.b32.xlu0 %v1258, 4
    %v1263 = vpop.permute.xlu0 %1262
    %1264 = vrot.lane.b32.xlu0 %v1259, 4
    %v1265 = vpop.permute.xlu0 %1264
    %v1266 = vsel %vm1151, %v1263, %v1265
    %v1267 = vsel %vm1151, %v1261, %v1263
    %v1268 = vsel %vm1151, %v1265, %v1261
    %1269 = vrot.lane.b32.xlu0 %v1257, 116
    %v1270 = vpop.permute.xlu0 %1269
    %1271 = vrot.lane.b32.xlu0 %v1258, 116
    %v1272 = vpop.permute.xlu0 %1271
    %1273 = vrot.lane.b32.xlu0 %v1259, 116
    %v1274 = vpop.permute.xlu0 %1273
    %v1275 = vsel %vm1161, %v1272, %v1274
    %v1276 = vsel %vm1161, %v1270, %v1272
    %v1277 = vsel %vm1161, %v1274, %v1270
    %v1278 = vsel %vm1165, %v1268, %v1276
    %v1279 = vsel %vm1166, %v1267, %v1275
    %v1280 = vsel %vm1167, %v1266, %v1277
    %v1281 = vadd.f32 %v1257, %v1278
    %v1282 = vadd.f32 %v1258, %v1279
    %v1283 = vadd.f32 %v1259, %v1280
    %1284 = vrot.lane.b32.xlu0 %v1281, 8
    %v1285 = vpop.permute.xlu0 %1284
    %1286 = vrot.lane.b32.xlu0 %v1282, 8
    %v1287 = vpop.permute.xlu0 %1286
    %1288 = vrot.lane.b32.xlu0 %v1283, 8
    %v1289 = vpop.permute.xlu0 %1288
    %v1290 = vsel %vm1180, %v1287, %v1289
    %v1291 = vsel %vm1180, %v1285, %v1287
    %v1292 = vsel %vm1180, %v1289, %v1285
    %1293 = vrot.lane.b32.xlu0 %v1281, 120
    %v1294 = vpop.permute.xlu0 %1293
    %1295 = vrot.lane.b32.xlu0 %v1282, 120
    %v1296 = vpop.permute.xlu0 %1295
    %1297 = vrot.lane.b32.xlu0 %v1283, 120
    %v1298 = vpop.permute.xlu0 %1297
    %v1299 = vsel %vm1190, %v1296, %v1298
    %v1300 = vsel %vm1190, %v1294, %v1296
    %v1301 = vsel %vm1190, %v1298, %v1294
    %v1302 = vsel %vm1194, %v1292, %v1300
    %v1303 = vsel %vm1195, %v1291, %v1299
    %v1304 = vsel %vm1196, %v1290, %v1301
    %v1305 = vadd.f32 %v1281, %v1302
    %v1306 = vadd.f32 %v1282, %v1303
    %v1307 = vadd.f32 %v1283, %v1304
    %v1308 = vrcp.pop %v1305
    %v1309 = vmul.f32 %v1207, %v1308
    %v1310 = vrcp.pop %v1306
    %v1311 = vmul.f32 %v1209, %v1310
    %v1312 = vrcp.pop %v1307
    %v1313 = vmul.f32 %v1211, %v1312
    %1314 = vst [vmem:[#allocation2] sm:$0xff] %v1309
    %1315 = vst [vmem:[#allocation2 + $0x8] sm:$0xff] %v1311
    %1316 = vst [vmem:[#allocation2 + $0x10] sm:$0xff] %v1313
    // Predicated region
    $region26: #{tpu_custom_call.1} parent=1 // pred_check
      _
    $region27: #{tpu_custom_call.1} parent=1 // pred_check_branch
      %1318 = sbr.rel (0) target = $region29
    $region28: #{tpu_custom_call.1} parent=1 // pred_region
      %s1320 = ssub.s32 384, 384
      %1321 = vsyncadd [#allocation3], %s1320
      %s1323 = sshll.u32 [#allocation2], 4
      %s1324 = int_to_ptr.vmem [resolvable:$true] %s1323
      %1326 = dma.vmem_to_hbm [thread:$0]  %s1324, 384, %s6, [#allocation3]
    $region29: #{tpu_custom_call.1} parent=1 // pred_fallthru
      _
    // Predicated region
    $region30: #{tpu_custom_call.1} parent=1 // pred_check
      _
    $region31: #{tpu_custom_call.1} parent=1 // pred_check_branch
      %1328 = sbr.rel (0) target = $region33
    $region32: #{tpu_custom_call.1} parent=1 // pred_region
      %1329 = dma.done [#allocation3], 384
    $region33: #{tpu_custom_call.1} parent=1 // pred_fallthru
      _
    %1330 = vsyncpa [#allocation3], 1

</llo_original>
